<compile_context>
chip_gen: v6e
topology: v6e:2x2x1
jax: 0.10.0
libtpu: 0.0.40
codegen_flags: <defaults>
</compile_context>

<pallas_src>
import functools

import jax
import jax.numpy as jnp
from jax.experimental import pallas as pl
from jax.experimental.pallas import tpu as pltpu

_LANES = 128
_SUBLANES = 8
_MIN_PIPELINE_BYTES = 1 << 20  # below ~1 MiB a single block is fine (no pipeline win)


def _sigmoid_range_kernel(x_ref, o_ref, *, scale, offset, compute_dtype):
    x = x_ref[...].astype(compute_dtype)
    # sigmoid(x)*(high-low)+low == 0.5*(high-low)*tanh(x/2) + 0.5*(high+low)
    y = scale * jnp.tanh(0.5 * x) + offset          # tanh -> EUP; mul/add -> VPU
    o_ref[...] = y.astype(o_ref.dtype)


def _device_kind():
    try:
        return jax.devices()[0].device_kind.lower()
    except Exception:
        return ""


def _tuning(x_dtype):
    """Generation-aware (target_block_bytes, vmem_limit_bytes, compute_dtype)."""
    kind = _device_kind()
    is_v7 = ("v7" in kind) or ("7x" in kind)
    is_big_vmem = any(g in kind for g in ("v4", "v5", "v6"))  # 128 MiB VMEM chips
    if is_v7:
        block_bytes, vmem_limit = 4 * 1024 * 1024, 32 * 1024 * 1024   # 64 MiB physical
    elif is_big_vmem:
        block_bytes, vmem_limit = 8 * 1024 * 1024, 64 * 1024 * 1024   # 128 MiB physical
    else:
        block_bytes, vmem_limit = 4 * 1024 * 1024, 32 * 1024 * 1024   # unknown: conservative
    # bf16 transcendentals only where the EUP/VPU has a bf16 path (v6e / v7x).
    if x_dtype == jnp.bfloat16 and (is_v7 or "v6" in kind):
        compute_dtype = jnp.bfloat16
    else:
        compute_dtype = jnp.float32
    return block_bytes, vmem_limit, compute_dtype


def _round_up(v, m):
    return ((v + m - 1) // m) * m


def _choose_block_rows(rows, row_bytes, target_block_bytes):
    """Rows (of 128 lanes) per block: full extent for small tensors, otherwise
    a multiple of 8 chosen so the block count is even and >= 2 (pipelining +
    balanced v7x TensorCore sharding) with roughly target_block_bytes blocks."""
    total_bytes = rows * row_bytes
    if total_bytes <= _MIN_PIPELINE_BYTES or rows <= _SUBLANES:
        return rows  # single full-extent block
    target_rows = max(_SUBLANES,
                      (target_block_bytes // row_bytes) // _SUBLANES * _SUBLANES)
    num_blocks = max(2, pl.cdiv(rows, target_rows))
    num_blocks += num_blocks % 2                     # even -> both v7x TCs get equal work
    block_rows = _round_up(pl.cdiv(rows, num_blocks), _SUBLANES)
    return max(_SUBLANES, min(block_rows, rows))


def sigmoid_range(x, low, high):
    """sigmoid(x) * (high - low) + low, elementwise, via a Pallas TPU kernel."""
    orig_shape = x.shape
    dtype = x.dtype
    n = x.size
    if n == 0:
        return x

    scale = 0.5 * (float(high) - float(low))
    offset = 0.5 * (float(high) + float(low))
    block_bytes, vmem_limit, compute_dtype = _tuning(dtype)

    kernel = functools.partial(_sigmoid_range_kernel, scale=scale, offset=offset,
                               compute_dtype=compute_dtype)
    params = pltpu.CompilerParams(dimension_semantics=("parallel",),
                                  vmem_limit_bytes=vmem_limit)
    itemsize = jnp.dtype(dtype).itemsize
    row_bytes = _LANES * itemsize
    x_flat = jnp.ravel(x)  # free reshape for contiguous input

    if n % _LANES == 0:
        # Zero-copy aligned path: lane-dense (rows, 128) view.
        rows = n // _LANES
        block_rows = _choose_block_rows(rows, row_bytes, block_bytes)
        x2d = x_flat.reshape(rows, _LANES)
        out = pl.pallas_call(
            kernel,
            out_shape=jax.ShapeDtypeStruct((rows, _LANES), dtype),
            grid=(pl.cdiv(rows, block_rows),),
            in_specs=[pl.BlockSpec((block_rows, _LANES), lambda i: (i, 0))],
            out_specs=pl.BlockSpec((block_rows, _LANES), lambda i: (i, 0)),
            compiler_params=params,
        )(x2d)
        return out.reshape(orig_shape)

    # Ragged path: 1-D blocks over the unpadded flat array; the last block is
    # partial and Pallas masks its out-of-bounds writes (elementwise => safe).
    # No jnp.pad and no output slice => no extra HBM passes.
    if n <= _LANES:
        block_elems = n                              # single full-extent block
    else:
        rows_equiv = n // _LANES
        block_rows = _choose_block_rows(rows_equiv, row_bytes, block_bytes)
        block_elems = block_rows * _LANES            # multiple of 128, <= n
    out = pl.pallas_call(
        kernel,
        out_shape=jax.ShapeDtypeStruct((n,), dtype),
        grid=(pl.cdiv(n, block_elems),),
        in_specs=[pl.BlockSpec((block_elems,), lambda i: (i,))],
        out_specs=pl.BlockSpec((block_elems,), lambda i: (i,)),
        compiler_params=params,
    )(x_flat)
    return out.reshape(orig_shape)


class SigmoidRange:
    """JAX/Pallas mirror of the PyTorch SigmoidRange module."""

    def __init__(self, low, high):
        self.low, self.high = low, high

    def __call__(self, x):
        return sigmoid_range(x, self.low, self.high)


if __name__ == "__main__":
    low, high = -1.0, 3.0
    mod = SigmoidRange(low, high)

    def ref(x):
        return jax.nn.sigmoid(x.astype(jnp.float32)) * (high - low) + low

    key = jax.random.PRNGKey(0)
    k1, k2, k3, k4, k5 = jax.random.split(key, 5)

    # 1) Small aligned shape consistent with the module (zero-copy (rows,128) path).
    x1 = jax.random.normal(k1, (2, 4, 16, 16), dtype=jnp.float32)
    y1 = jax.block_until_ready(mod(x1))
    assert y1.shape == x1.shape and y1.dtype == x1.dtype
    assert jnp.allclose(y1, ref(x1), atol=1e-5, rtol=1e-5)

    # 2) Larger aligned shape -> >= 2 even-sized blocks on the "parallel" grid.
    x2 = jax.random.normal(k2, (8, 8, 128, 128), dtype=jnp.float32)
    y2 = jax.block_until_ready(mod(x2))
    assert jnp.allclose(y2, ref(x2), atol=1e-5, rtol=1e-5)

    # 3) Ragged size -> 1-D blocked path with masked partial last block (no pad/slice).
    x3 = jax.random.normal(k3, (3, 5, 7, 11), dtype=jnp.float32)
    y3 = jax.block_until_ready(mod(x3))
    assert y3.shape == x3.shape
    assert jnp.allclose(y3, ref(x3), atol=1e-5, rtol=1e-5)

    # 4) Tiny ragged size (< 128 elements) -> single full-extent 1-D block.
    x4 = jax.random.normal(k4, (7, 11), dtype=jnp.float32)
    y4 = jax.block_until_ready(mod(x4))
    assert jnp.allclose(y4, ref(x4), atol=1e-5, rtol=1e-5)

    # 5) bf16 input (bf16 compute on v6e/v7x, f32 compute elsewhere).
    x5 = jax.random.normal(k5, (2, 4, 16, 16), dtype=jnp.bfloat16)
    y5 = jax.block_until_ready(mod(x5))
    assert y5.dtype == jnp.bfloat16
    assert jnp.allclose(y5.astype(jnp.float32), ref(x5), atol=5e-2, rtol=5e-2)

    print("KERNEL_OK")
</pallas_src>

<mosaic_0001>
module attributes {stable_mosaic.version = 11 : i64} {
  func.func @_sigmoid_range_kernel(%arg0: i32, %arg1: memref<16x128xf32, #tpu.memory_space<vmem>>, %arg2: memref<16x128xf32, #tpu.memory_space<vmem>>) attributes {dimension_semantics = [#tpu.dimension_semantics<parallel>], iteration_bounds = array<i64: 1>, scalar_prefetch = 0 : i64, scratch_operands = 0 : i64, tpu.core_type = #tpu.core_type<tc>, window_params = [{transform_indices = @transform_0, window_bounds = array<i64: 16, 128>}, {transform_indices = @transform_1, window_bounds = array<i64: 16, 128>}]} {
    %c0 = arith.constant 0 : index
    %c0_0 = arith.constant 0 : index
    %0 = vector.load %arg1[%c0, %c0_0] : memref<16x128xf32, #tpu.memory_space<vmem>>, vector<16x128xf32>
    %cst = arith.constant 5.000000e-01 : f32
    %1 = vector.broadcast %cst : f32 to vector<16x128xf32>
    %2 = arith.mulf %1, %0 : vector<16x128xf32>
    %3 = math.tanh %2 : vector<16x128xf32>
    %cst_1 = arith.constant 2.000000e+00 : f32
    %4 = vector.broadcast %cst_1 : f32 to vector<16x128xf32>
    %5 = arith.mulf %4, %3 : vector<16x128xf32>
    %cst_2 = arith.constant 1.000000e+00 : f32
    %6 = vector.broadcast %cst_2 : f32 to vector<16x128xf32>
    %7 = arith.addf %5, %6 : vector<16x128xf32>
    %c0_3 = arith.constant 0 : index
    %c0_4 = arith.constant 0 : index
    %8 = vector.load %arg2[%c0_3, %c0_4] : memref<16x128xf32, #tpu.memory_space<vmem>>, vector<16x128xf32>
    tpu.vector_store %arg2[%c0_3, %c0_4], %7 {strides = array<i32>} : memref<16x128xf32, #tpu.memory_space<vmem>>, vector<16x128xf32>,
    return
  }
  func.func @transform_0(%arg0: i32) -> (i32, i32) {
    %c0_i32 = arith.constant 0 : i32
    %c0_i32_0 = arith.constant 0 : i32
    return %arg0, %c0_i32 : i32, i32
  }
  func.func @transform_1(%arg0: i32) -> (i32, i32) {
    %c0_i32 = arith.constant 0 : i32
    %c0_i32_0 = arith.constant 0 : i32
    return %arg0, %c0_i32 : i32, i32
  }
}

</mosaic_0001>

<llo_original>
// kernel: tpu_custom_call.1
$region0: #{tpu_custom_call.1}
  #allocation0 [shape = 'u32[]', space=smem, size = 0x4, offset = 0x4, fixed_abs, tag = 'smem constant byte address 0x4 - core index']
  #allocation1 [shape = 'u32[144,128]{1,0:T(1,128)}', space=vmem, size = 0x12000, scoped, tag = 'internal scratch']
  %s0 = inlined_call_operand.hbm [shape: f32[16,128], index: 0, kind: input, shape index: {}]
  %s1 = inlined_call_operand.hbm [shape: f32[16,128], index: 1, kind: output, shape index: {}]
  %s2 = sld [smem:[#allocation0]]
  $region18: #{tpu_custom_call.1} parent=0
    _
  %s4 = ssub.s32 1, %s2
  %s5 = scalar_select 0, %s4, %s2
  $region1: #{tpu_custom_call.1} parent=0
    #allocation2 [shape = 'u8[8192]{0}', space=vmem, size = 0x2000, scoped, tag = 'input window, operand 0, single buffered']
    #allocation3 [shape = 's32[1]{0}', space=sflag, size = 0x4, scoped, tag = 'scoped memory for tpu_custom_call.1']
    #allocation4 [shape = 's32[1]{0}', space=sflag, size = 0x4, scoped, tag = 'scoped memory for tpu_custom_call.1']
    #allocation5 [shape = 'u8[8192]{0}', space=vmem, size = 0x2000, scoped, tag = 'output window, operand 0, single buffered']
    %6 = vsyncpa [#allocation3], 0
    %7 = vsyncpa [#allocation4], 0
    // Predicated region
    $region2: #{tpu_custom_call.1} parent=1 // pred_check
      _
    $region3: #{tpu_custom_call.1} parent=1 // pred_check_branch
      %9 = sbr.rel (0) target = $region5
    $region4: #{tpu_custom_call.1} parent=1 // pred_region
      %s11 = ssub.s32 256, 256
      %12 = vsyncadd [#allocation3], %s11
      %s13 = sshll.u32 [#allocation2], 4
      %s14 = int_to_ptr.vmem [resolvable:$true] %s13
      %19 = dma.hbm_to_vmem [thread:$0]  %s0, 256, %s14, [#allocation3], 128, 128, 8
    $region5: #{tpu_custom_call.1} parent=1 // pred_fallthru
      _
    // Predicated region
    $region6: #{tpu_custom_call.1} parent=1 // pred_check
      _
    $region7: #{tpu_custom_call.1} parent=1 // pred_check_branch
      %21 = sbr.rel (0) target = $region9
    $region8: #{tpu_custom_call.1} parent=1 // pred_region
      %22 = dma.done [#allocation3], 256
    $region9: #{tpu_custom_call.1} parent=1 // pred_fallthru
      _
    %v23 = vld [vmem:[#allocation2] sm:$0xff]
    %v24 = vld [vmem:[#allocation2 + $0x8] sm:$0xff]
    %v25 = vmul.f32 %v23, 0.5
    %v26 = vmul.f32 %v24, 0.5
    %v27 = vtanh.pop %v25
    %v28 = vtanh.pop %v26
    %v29 = vmul.f32 %v27, 2.0
    %v30 = vmul.f32 %v28, 2.0
    %v31 = vadd.f32 %v29, 1.0
    %v32 = vadd.f32 %v30, 1.0
    %33 = vst [vmem:[#allocation5] sm:$0xff] %v31
    %34 = vst [vmem:[#allocation5 + $0x8] sm:$0xff] %v32
    // Predicated region
    $region10: #{tpu_custom_call.1} parent=1 // pred_check
      _
    $region11: #{tpu_custom_call.1} parent=1 // pred_check_branch
      %36 = sbr.rel (0) target = $region13
    $region12: #{tpu_custom_call.1} parent=1 // pred_region
      %s38 = ssub.s32 256, 256
      %39 = vsyncadd [#allocation4], %s38
      %s40 = sshll.u32 [#allocation5], 4
      %s41 = int_to_ptr.vmem [resolvable:$true] %s40
      %46 = dma.vmem_to_hbm [thread:$0]  %s41, 256, %s1, [#allocation4], 128, 128, 8
    $region13: #{tpu_custom_call.1} parent=1 // pred_fallthru
      _
    // Predicated region
    $region14: #{tpu_custom_call.1} parent=1 // pred_check
      _
    $region15: #{tpu_custom_call.1} parent=1 // pred_check_branch
      %48 = sbr.rel (0) target = $region17
    $region16: #{tpu_custom_call.1} parent=1 // pred_region
      %49 = dma.done [#allocation4], 256
    $region17: #{tpu_custom_call.1} parent=1 // pred_fallthru
      _
    %50 = vsyncpa [#allocation3], 1
    %51 = vsyncpa [#allocation4], 1

</llo_original>
